<compile_context>
chip_gen: v6e
topology: v6e:2x2x1
jax: 0.10.0
libtpu: 0.0.40
codegen_flags: <defaults>
</compile_context>

<pallas_src>
import jax
import jax.numpy as jnp
from jax import lax
from jax.experimental import pallas as pl
from jax.experimental.pallas import tpu as pltpu


def patch_embed_kernel(p_ref, w_ref, b_ref, o_ref):
    # p_ref: (m_blk, K)   w_ref: (K, c_blk)   b_ref: (1, c_blk)   o_ref: (m_blk, c_blk)
    acc = jnp.dot(p_ref[...], w_ref[...], preferred_element_type=jnp.float32)
    o_ref[...] = (acc + b_ref[...]).astype(o_ref.dtype)


def make_patch(x, weight, bias, patch_size, *, m_blk=None, c_blk=None):
    """x: (B, 3, H, W). weight: (C, 3, p, p) torch layout. bias: (C,).

    Returns (B, num_patches, C), identical to MakePatch.forward.
    """
    B, Cin, H, W = x.shape
    C = weight.shape[0]
    p = patch_size
    Hp, Wp = H // p, W // p
    NP = Hp * Wp
    K = Cin * p * p
    M = B * NP

    # im2col: layout-only (no arithmetic). Feature order (cin, ki, kj) matches
    # torch's weight.reshape(C, Cin*p*p) flattening; row order is (b, i, j),
    # matching view+transpose in the reference forward.
    patches = x.reshape(B, Cin, Hp, p, Wp, p)
    patches = patches.transpose(0, 2, 4, 1, 3, 5).reshape(M, K)

    w2d = weight.reshape(C, K).T          # (K, C): y = patches @ w2d + b
    b2d = bias.reshape(1, C)

    # --- tile selection -----------------------------------------------------
    if m_blk is None:
        if M % 16 == 0 and (M // 2) <= 1024:
            # >= 2 sublane-aligned "parallel" steps so v7x dual TCs both work.
            m_blk = M // 2
        else:
            m_blk = min(512, max(M, 8))
    grid_m = pl.cdiv(M, m_blk)
    M_pad = grid_m * m_blk
    if M_pad != M:
        patches = jnp.pad(patches, ((0, M_pad - M), (0, 0)))

    if c_blk is None:
        c_blk = 512 if (C > 512 and C % 512 == 0) else C
    assert C % c_blk == 0
    grid_c = C // c_blk

    cost = pl.CostEstimate(
        flops=2 * M_pad * K * C,
        transcendentals=0,
        bytes_accessed=4 * (M_pad * K + K * C + C + M_pad * C),
    )

    out2d = pl.pallas_call(
        patch_embed_kernel,
        out_shape=jax.ShapeDtypeStruct((M_pad, C), x.dtype),
        grid_spec=pltpu.PrefetchScalarGridSpec(
            num_scalar_prefetch=0,
            grid=(grid_m, grid_c),
            in_specs=[
                pl.BlockSpec((m_blk, K), lambda i, j: (i, 0)),   # patch rows (tiled M)
                pl.BlockSpec((K, c_blk), lambda i, j: (0, j)),   # weight (M-invariant)
                pl.BlockSpec((1, c_blk), lambda i, j: (0, j)),   # bias   (M-invariant)
            ],
            out_specs=pl.BlockSpec((m_blk, c_blk), lambda i, j: (i, j)),
        ),
        compiler_params=pltpu.CompilerParams(
            dimension_semantics=("parallel", "parallel")),
        cost_estimate=cost,
    )(patches, w2d, b2d)

    out2d = out2d[:M] if M_pad != M else out2d
    return out2d.reshape(B, NP, C)


def make_patch_ref(x, weight, bias, patch_size):
    """Pure-JAX reference mirroring the PyTorch forward exactly."""
    y = lax.conv_general_dilated(
        x, weight,
        window_strides=(patch_size, patch_size),
        padding="VALID",
        dimension_numbers=("NCHW", "OIHW", "NCHW"),
    )
    y = y + bias.reshape(1, -1, 1, 1)
    B, C = y.shape[0], y.shape[1]
    y = y.reshape(B, C, -1)
    return jnp.swapaxes(y, 1, 2)


if __name__ == "__main__":
    B, Cin, H, W = 2, 3, 32, 32
    PATCH = 4
    CHANNELS = 128            # lane-dense output (multiple of 128)

    key = jax.random.PRNGKey(0)
    kx, kw, kb = jax.random.split(key, 3)
    x = jax.random.normal(kx, (B, Cin, H, W), jnp.float32)
    weight = 0.05 * jax.random.normal(kw, (CHANNELS, Cin, PATCH, PATCH), jnp.float32)
    bias = 0.05 * jax.random.normal(kb, (CHANNELS,), jnp.float32)

    out = make_patch(x, weight, bias, PATCH)
    out = jax.block_until_ready(out)

    ref = make_patch_ref(x, weight, bias, PATCH)
    NP = (H // PATCH) * (W // PATCH)
    assert out.shape == (B, NP, CHANNELS)
    assert jnp.allclose(out, ref, atol=2e-3, rtol=2e-3), "mismatch vs JAX reference"

    print("KERNEL_OK")
</pallas_src>

<mosaic_0001>
module attributes {stable_mosaic.version = 11 : i64} {
  func.func @patch_embed_kernel(%arg0: i32, %arg1: i32, %arg2: memref<64x48xf32, #tpu.memory_space<vmem>>, %arg3: memref<48x128xf32, #tpu.memory_space<vmem>>, %arg4: memref<1x128xf32, #tpu.memory_space<vmem>>, %arg5: memref<64x128xf32, #tpu.memory_space<vmem>>) attributes {dimension_semantics = [#tpu.dimension_semantics<parallel>, #tpu.dimension_semantics<parallel>], iteration_bounds = array<i64: 2, 1>, scalar_prefetch = 0 : i64, scratch_operands = 0 : i64, tpu.core_type = #tpu.core_type<tc>, window_params = [{transform_indices = @transform_0, window_bounds = array<i64: 64, 48>}, {transform_indices = @transform_1, window_bounds = array<i64: 48, 128>}, {transform_indices = @transform_2, window_bounds = array<i64: 1, 128>}, {transform_indices = @transform_3, window_bounds = array<i64: 64, 128>}]} {
    %c0 = arith.constant 0 : index
    %c0_0 = arith.constant 0 : index
    %0 = vector.load %arg2[%c0, %c0_0] : memref<64x48xf32, #tpu.memory_space<vmem>>, vector<64x48xf32>
    %c0_1 = arith.constant 0 : index
    %c0_2 = arith.constant 0 : index
    %1 = vector.load %arg3[%c0_1, %c0_2] : memref<48x128xf32, #tpu.memory_space<vmem>>, vector<48x128xf32>
    %cst = arith.constant dense<0.000000e+00> : vector<64x128xf32>
    %2 = tpu.matmul %0, %1, %cst {dimension_numbers = #tpu.dot_dimension_numbers<[1], [0], [0], [1], [0, 0, 1, 1], [], []>} : vector<64x48xf32>, vector<48x128xf32>, vector<64x128xf32> -> vector<64x128xf32>
    %c0_3 = arith.constant 0 : index
    %c0_4 = arith.constant 0 : index
    %3 = vector.load %arg4[%c0_3, %c0_4] : memref<1x128xf32, #tpu.memory_space<vmem>>, vector<1x128xf32>
    %4 = vector.broadcast %3 : vector<1x128xf32> to vector<64x128xf32>
    %5 = arith.addf %2, %4 : vector<64x128xf32>
    %c0_5 = arith.constant 0 : index
    %c0_6 = arith.constant 0 : index
    %6 = vector.load %arg5[%c0_5, %c0_6] : memref<64x128xf32, #tpu.memory_space<vmem>>, vector<64x128xf32>
    tpu.vector_store %arg5[%c0_5, %c0_6], %5 {strides = array<i32>} : memref<64x128xf32, #tpu.memory_space<vmem>>, vector<64x128xf32>,
    return
  }
  func.func @transform_0(%arg0: i32, %arg1: i32) -> (i32, i32) {
    %c0_i32 = arith.constant 0 : i32
    %c0_i32_0 = arith.constant 0 : i32
    return %arg0, %c0_i32 : i32, i32
  }
  func.func @transform_1(%arg0: i32, %arg1: i32) -> (i32, i32) {
    %c0_i32 = arith.constant 0 : i32
    %c0_i32_0 = arith.constant 0 : i32
    return %c0_i32, %arg1 : i32, i32
  }
  func.func @transform_2(%arg0: i32, %arg1: i32) -> (i32, i32) {
    %c0_i32 = arith.constant 0 : i32
    %c0_i32_0 = arith.constant 0 : i32
    return %c0_i32, %arg1 : i32, i32
  }
  func.func @transform_3(%arg0: i32, %arg1: i32) -> (i32, i32) {
    %c0_i32 = arith.constant 0 : i32
    return %arg0, %arg1 : i32, i32
  }
}

</mosaic_0001>

<llo_original>
// kernel: tpu_custom_call.1
$region0: #{tpu_custom_call.1}
  #allocation0 [shape = 'u32[]', space=smem, size = 0x4, offset = 0x4, fixed_abs, tag = 'smem constant byte address 0x4 - core index']
  #allocation1 [shape = 'u32[144,128]{1,0:T(1,128)}', space=vmem, size = 0x12000, scoped, tag = 'internal scratch']
  %s0 = inlined_call_operand.vmem [shape: f32[128,48], index: 0, kind: input, shape index: {}]
  %s1 = inlined_call_operand.vmem [shape: f32[48,128], index: 1, kind: input, shape index: {}]
  %s2 = inlined_call_operand.vmem [shape: f32[1,128], index: 2, kind: input, shape index: {}]
  %s3 = inlined_call_operand.hbm [shape: f32[128,128], index: 3, kind: output, shape index: {}]
  %s4 = sld [smem:[#allocation0]]
  $region45: #{tpu_custom_call.1} parent=0
    _
  %s6 = ssub.s32 1, %s4
  %s7 = scalar_select 0, %s6, %s4
  $region1: #{tpu_custom_call.1} parent=0
    #allocation2 [shape = 'u8[65536]{0}', space=vmem, size = 0x10000, scoped, tag = 'output window, operand 0']
    #allocation3 [shape = 's32[2]{0}', space=sflag, size = 0x8, scoped, tag = 'scoped memory for tpu_custom_call.1']
    %8 = vsyncpa [#allocation3], 0
    %s9 = scalar_lea.sflag [#allocation3], 1
    %10 = vsyncpa %s9, 0
    loop: start=0, step=1, limit=4
    $region2: #{tpu_custom_call.1} parent=1 // loop_pre_header
      _
    $region3: #{tpu_custom_call.1} parent=1 // loop_header
      %s12 = sphi 0, %s16
      %p13 = scmp.ge.s32.totalorder %s12, 4
      %s19 = sphi 0, %s31
      %s20 = sphi 0, %s27
      %s21 = sphi 0, %s19
      %s22 = sphi 0, %s20
      %s23 = sphi 0, %s21
      %s24 = sphi 0, %s22
      %s34 = sphi 0, %s36
      %s37 = sphi 0, %s34
      %s38 = sphi 0, %s37
      %s54 = sphi 0, %s38
      %s60 = sphi 0, %s62
      %s63 = sphi 0, %s60
      %s64 = sphi 0, %s63
      %s80 = sphi 0, %s64
      %s86 = sphi 0, %s88
      %s89 = sphi 0, %s86
      %s90 = sphi 0, %s89
      %s106 = sphi 0, %s90
      %s114 = sphi 0, %s116
      %s117 = sphi 0, %s114
      %s118 = sphi 0, %s117
      %s134 = sphi 0, %s118
    $region4: #{tpu_custom_call.1} parent=1 // loop_header_branch
      %15 = sbr.rel (%p13) target = $region8
    $region5: #{tpu_custom_call.1} parent=1 // loop_body
      %s17 = ssub.s32 %s12, 1
      %s18 = ssub.s32 %s12, 2
      %s25 = sadd.s32 1, %s20
      %p26 = scmp.ge.s32.totalorder %s25, 1
      %s27 = scalar_select %p26, 0, %s25
      %s28 = sadd.s32 1, %s19
      %s29 = scalar_select %p26, %s28, %s19
      %p30 = scmp.ge.s32.totalorder %s29, 2
      %s31 = scalar_select %p30, 0, %s29
      %s32 = ssub.s32 %s19, %s31
      %p33 = scmp.eq.s32.totalorder %s32, 0
      %s35 = sadd.s32 %s34, 1
      %s36 = scalar_select %p33, %s34, %s35
      %p39 = pneg %p33
      %p40 = scmp.eq.s32.totalorder %s12, 1
      %p41 = por %p39, %p40
      %p42 = scmp.ne.s32.totalorder %s34, %s37
      %p43 = scmp.eq.s32.totalorder %s12, 0
      %p44 = por %p42, %p43
      %p45 = scmp.ne.s32.totalorder %s34, %s37
      %p46 = scmp.eq.s32.totalorder %s17, 1
      %p47 = por %p45, %p46
      %p48 = scmp.ne.s32.totalorder %s37, %s38
      %p49 = scmp.eq.s32.totalorder %s17, 0
      %p50 = por %p48, %p49
      %p51 = scmp.ne.s32.totalorder %s37, %s38
      %p52 = scmp.eq.s32.totalorder %s18, 1
      %p53 = por %p51, %p52
      %p55 = scmp.ne.s32.totalorder %s38, %s54
      %p56 = scmp.eq.s32.totalorder %s18, 0
      %p57 = por %p55, %p56
      %s58 = ssub.s32 %s20, %s27
      %p59 = scmp.eq.s32.totalorder %s58, 0
      %s61 = sadd.s32 %s60, 1
      %s62 = scalar_select %p59, %s60, %s61
      %p65 = pneg %p59
      %p66 = scmp.eq.s32.totalorder %s12, 1
      %p67 = por %p65, %p66
      %p68 = scmp.ne.s32.totalorder %s60, %s63
      %p69 = scmp.eq.s32.totalorder %s12, 0
      %p70 = por %p68, %p69
      %p71 = scmp.ne.s32.totalorder %s60, %s63
      %p72 = scmp.eq.s32.totalorder %s17, 1
      %p73 = por %p71, %p72
      %p74 = scmp.ne.s32.totalorder %s63, %s64
      %p75 = scmp.eq.s32.totalorder %s17, 0
      %p76 = por %p74, %p75
      %p77 = scmp.ne.s32.totalorder %s63, %s64
      %p78 = scmp.eq.s32.totalorder %s18, 1
      %p79 = por %p77, %p78
      %p81 = scmp.ne.s32.totalorder %s64, %s80
      %p82 = scmp.eq.s32.totalorder %s18, 0
      %p83 = por %p81, %p82
      %s84 = ssub.s32 %s20, %s27
      %p85 = scmp.eq.s32.totalorder %s84, 0
      %s87 = sadd.s32 %s86, 1
      %s88 = scalar_select %p85, %s86, %s87
      %p91 = pneg %p85
      %p92 = scmp.eq.s32.totalorder %s12, 1
      %p93 = por %p91, %p92
      %p94 = scmp.ne.s32.totalorder %s86, %s89
      %p95 = scmp.eq.s32.totalorder %s12, 0
      %p96 = por %p94, %p95
      %p97 = scmp.ne.s32.totalorder %s86, %s89
      %p98 = scmp.eq.s32.totalorder %s17, 1
      %p99 = por %p97, %p98
      %p100 = scmp.ne.s32.totalorder %s89, %s90
      %p101 = scmp.eq.s32.totalorder %s17, 0
      %p102 = por %p100, %p101
      %p103 = scmp.ne.s32.totalorder %s89, %s90
      %p104 = scmp.eq.s32.totalorder %s18, 1
      %p105 = por %p103, %p104
      %p107 = scmp.ne.s32.totalorder %s90, %s106
      %p108 = scmp.eq.s32.totalorder %s18, 0
      %p109 = por %p107, %p108
      %s110 = ssub.s32 %s19, %s31
      %s111 = ssub.s32 %s20, %s27
      %s112 = sor.u32 %s110, %s111
      %p113 = scmp.eq.s32.totalorder %s112, 0
      %s115 = sadd.s32 %s114, 1
      %s116 = scalar_select %p113, %s114, %s115
      %p119 = pneg %p113
      %p120 = scmp.eq.s32.totalorder %s12, 1
      %p121 = por %p119, %p120
      %p122 = scmp.ne.s32.totalorder %s114, %s117
      %p123 = scmp.eq.s32.totalorder %s12, 0
      %p124 = por %p122, %p123
      %p125 = scmp.ne.s32.totalorder %s114, %s117
      %p126 = scmp.eq.s32.totalorder %s17, 1
      %p127 = por %p125, %p126
      %p128 = scmp.ne.s32.totalorder %s117, %s118
      %p129 = scmp.eq.s32.totalorder %s17, 0
      %p130 = por %p128, %p129
      %p131 = scmp.ne.s32.totalorder %s117, %s118
      %p132 = scmp.eq.s32.totalorder %s18, 1
      %p133 = por %p131, %p132
      %p135 = scmp.ne.s32.totalorder %s118, %s134
      %p136 = scmp.eq.s32.totalorder %s18, 0
      %p137 = por %p135, %p136
      %p138 = scmp.le.s32.totalorder 1, %s12
      %p139 = scmp.lt.s32.totalorder %s12, 3
      %p140 = pnand %p138, %p139
      %p141 = pneg %p140
      // Predicated region
      $region9: #{tpu_custom_call.1} parent=5 // pred_check
        _
      $region10: #{tpu_custom_call.1} parent=5 // pred_check_branch
        %143 = sbr.rel (%p140) target = $region12
      $region11: #{tpu_custom_call.1} parent=5 // pred_region
        %s144 = ssub.s32 %s12, 1
        // Predicated region
        $region13: #{tpu_custom_call.1} parent=11 // pred_check
          %p145 = pneg %p76
        $region14: #{tpu_custom_call.1} parent=11 // pred_check_branch
          %147 = sbr.rel (%p145) target = $region16
        $region15: #{tpu_custom_call.1} parent=11 // pred_region
          %p148 = scmp.lt.s32.totalorder %s22, 0
          %s149 = scalar_select %p148, %s22, 0
          %s150 = smul.addr %s149, 8
          %s151 = scalar_lea.vmem %s1, %s150
        $region16: #{tpu_custom_call.1} parent=11 // pred_fallthru
          _
        // Predicated region
        $region17: #{tpu_custom_call.1} parent=11 // pred_check
          %p152 = pneg %p102
        $region18: #{tpu_custom_call.1} parent=11 // pred_check_branch
          %154 = sbr.rel (%p152) target = $region20
        $region19: #{tpu_custom_call.1} parent=11 // pred_region
          %p155 = scmp.lt.s32.totalorder %s22, 0
          %s156 = scalar_select %p155, %s22, 0
          %s157 = scalar_lea.vmem %s2, %s156
        $region20: #{tpu_custom_call.1} parent=11 // pred_fallthru
          _
      $region12: #{tpu_custom_call.1} parent=5 // pred_fallthru
        _
      %p158 = scmp.lt.s32.totalorder %s12, 2
      // Predicated region
      $region21: #{tpu_custom_call.1} parent=5 // pred_check
        %p159 = pneg %p158
      $region22: #{tpu_custom_call.1} parent=5 // pred_check_branch
        %161 = sbr.rel (%p159) target = $region24
      $region23: #{tpu_custom_call.1} parent=5 // pred_region
        // Predicated region
        $region25: #{tpu_custom_call.1} parent=23 // pred_check
          %p162 = pneg %p44
        $region26: #{tpu_custom_call.1} parent=23 // pred_check_branch
          %164 = sbr.rel (%p162) target = $region28
        $region27: #{tpu_custom_call.1} parent=23 // pred_region
          %s165 = smul.u32 8, %s19
          %p166 = scmp.lt.s32.totalorder %s165, 15
          %s167 = scalar_select %p166, %s165, 15
          %s168 = smul.addr %s167, 8
          %s169 = scalar_lea.vmem %s0, %s168
          %s170 = smul.u32 8, %s19
        $region28: #{tpu_custom_call.1} parent=23 // pred_fallthru
          _
      $region24: #{tpu_custom_call.1} parent=5 // pred_fallthru
        _
      %p171 = scmp.le.s32.totalorder 1, %s12
      %p172 = scmp.lt.s32.totalorder %s12, 3
      %p173 = pnand %p171, %p172
      %p174 = pneg %p173
      // Predicated region
      $region29: #{tpu_custom_call.1} parent=5 // pred_check
        _
      $region30: #{tpu_custom_call.1} parent=5 // pred_check_branch
        %176 = sbr.rel (%p173) target = $region32
      $region31: #{tpu_custom_call.1} parent=5 // pred_region
        %s177 = ssub.s32 %s12, 1
        %s178 = smul.u32 8, %s21
        %p179 = scmp.lt.s32.totalorder %s178, 15
        %s180 = scalar_select %p179, %s178, 15
        %s181 = smul.addr %s180, 8
        %s182 = scalar_lea.vmem %s0, %s181
        %p183 = pneg %p50
        %p184 = pneg %p47
        %p185 = scmp.lt.s32.totalorder %s22, 0
        %s186 = scalar_select %p185, %s22, 0
        %s187 = smul.addr %s186, 8
        %s188 = scalar_lea.vmem %s1, %s187
        %p189 = pneg %p76
        %p190 = pneg %p73
        %p191 = scmp.lt.s32.totalorder %s22, 0
        %s192 = scalar_select %p191, %s22, 0
        %s193 = scalar_lea.vmem %s2, %s192
        %p194 = pneg %p102
        %p195 = pneg %p99
        %p196 = pneg %p130
        %p197 = pneg %p127
        %s198 = sand.u32 %s117, 1
        %s199 = scalar_lea.sflag [#allocation3], %s198
        %s200 = sand.u32 %s117, 1
        %s201 = smul.addr %s200, 64
        %s202 = scalar_lea.vmem [#allocation2], %s201
        %s203 = smul.u32 8, %s21
        %p204 = scmp.lt.s32.totalorder %s203, 15
        %s205 = scalar_select %p204, %s203, 15
        %s206 = smul.addr %s205, 8
        %s207 = scalar_lea.vmem %s0, %s206
        %s208 = smul.u32 8, %s21
        %p209 = scmp.lt.s32.totalorder %s22, 0
        %s210 = scalar_select %p209, %s22, 0
        %s211 = smul.addr %s210, 8
        %s212 = scalar_lea.vmem %s1, %s211
        %p213 = scmp.lt.s32.totalorder %s22, 0
        %s214 = scalar_select %p213, %s22, 0
        %s215 = scalar_lea.vmem %s2, %s214
        %s216 = smul.u32 8, %s21
        %v217 = vld [vmem:[%s207] sm:$0xff]
        %v218 = vld [vmem:[%s207 + $0x8] sm:$0xff]
        %v219 = vld [vmem:[%s207 + $0x10] sm:$0xff]
        %v220 = vld [vmem:[%s207 + $0x18] sm:$0xff]
        %v221 = vld [vmem:[%s207 + $0x20] sm:$0xff]
        %v222 = vld [vmem:[%s207 + $0x28] sm:$0xff]
        %v223 = vld [vmem:[%s207 + $0x30] sm:$0xff]
        %v224 = vld [vmem:[%s207 + $0x38] sm:$0xff]
        %v225 = vld [vmem:[%s212] sm:$0xff]
        %v226 = vld [vmem:[%s212 + $0x8] sm:$0xff]
        %v227 = vld [vmem:[%s212 + $0x10] sm:$0xff]
        %v228 = vld [vmem:[%s212 + $0x18] sm:$0xff]
        %v229 = vld [vmem:[%s212 + $0x20] sm:$0xff]
        %v230 = vld [vmem:[%s212 + $0x28] sm:$0xff]
        %v231 = vld [vmem:[%s215] sm:$0x1]
        %v233 = vlaneseq
        %v234 = vshrl.u32 %v233, 7
        %v235 = vsub.s32 0, %v234
        %v236 = vrot.slane %v231, %v235
        %vm238 = vcmask 392192
        %v240 = vsel %vm238, %v217, 0
        %v243 = vsel %vm238, %v218, 0
        %v246 = vsel %vm238, %v219, 0
        %v249 = vsel %vm238, %v220, 0
        %v252 = vsel %vm238, %v221, 0
        %v255 = vsel %vm238, %v222, 0
        %v258 = vsel %vm238, %v223, 0
        %v261 = vsel %vm238, %v224, 0
        %263 = vmatprep.subr.mxu0 0.0
        %264 = vmatpush1.msra.mxu0 0.0
        %265 = vmatprep.subr.mxu0 0.0
        %266 = vmatpush1.msra.mxu0 0.0
        %267 = vmatprep.subr.mxu0 0.0
        %268 = vmatpush1.msra.mxu0 0.0
        %269 = vmatprep.subr.mxu0 0.0
        %270 = vmatpush1.msra.mxu0 0.0
        %271 = vmatprep.subr.mxu0 0.0
        %272 = vmatpush1.msra.mxu0 0.0
        %273 = vmatprep.subr.mxu0 0.0
        %274 = vmatpush1.msra.mxu0 0.0
        %275 = vmatprep.subr.mxu0 0.0
        %276 = vmatpush1.msra.mxu0 0.0
        %277 = vmatprep.subr.mxu0 0.0
        %278 = vmatpush1.msra.mxu0 0.0
        %279 = vmatprep.subr.mxu0 0.0
        %280 = vmatpush1.msra.mxu0 0.0
        %281 = vmatprep.subr.mxu0 0.0
        %282 = vmatpush1.msra.mxu0 0.0
        %283 = vmatprep.subr.mxu0 0.0
        %284 = vmatpush1.msra.mxu0 %v230
        %285 = vmatprep.subr.mxu0 0.0
        %286 = vmatpush1.msra.mxu0 %v229
        %287 = vmatprep.subr.mxu0 0.0
        %288 = vmatpush1.msra.mxu0 %v228
        %289 = vmatprep.subr.mxu0 0.0
        %290 = vmatpush1.msra.mxu0 %v227
        %291 = vmatprep.subr.mxu0 0.0
        %292 = vmatpush1.msra.mxu0 %v226
        %293 = vmatprep.subr.mxu0 0.0
        %294 = vmatpush1.msra.mxu0 %v225
        %295 = vmatprep.subr.mxu0 0.0
        %296 = vmatpush2.msra.mxu0 0.0
        %297 = vmatprep.subr.mxu0 0.0
        %298 = vmatpush2.msra.mxu0 0.0
        %299 = vmatprep.subr.mxu0 0.0
        %300 = vmatpush2.msra.mxu0 0.0
        %301 = vmatprep.subr.mxu0 0.0
        %302 = vmatpush2.msra.mxu0 0.0
        %303 = vmatprep.subr.mxu0 0.0
        %304 = vmatpush2.msra.mxu0 0.0
        %305 = vmatprep.subr.mxu0 0.0
        %306 = vmatpush2.msra.mxu0 0.0
        %307 = vmatprep.subr.mxu0 0.0
        %308 = vmatpush2.msra.mxu0 0.0
        %309 = vmatprep.subr.mxu0 0.0
        %310 = vmatpush2.msra.mxu0 0.0
        %311 = vmatprep.subr.mxu0 0.0
        %312 = vmatpush2.msra.mxu0 0.0
        %313 = vmatprep.subr.mxu0 0.0
        %314 = vmatpush2.msra.mxu0 0.0
        %315 = vmatprep.subr.mxu0 0.0
        %316 = vmatpush2.msra.mxu0 0.0
        %317 = vmatprep.subr.mxu0 0.0
        %318 = vmatpush2.msra.mxu0 0.0
        %319 = vmatprep.subr.mxu0 0.0
        %320 = vmatpush2.msra.mxu0 0.0
        %321 = vmatprep.subr.mxu0 0.0
        %322 = vmatpush2.msra.mxu0 0.0
        %323 = vmatprep.subr.mxu0 0.0
        %324 = vmatpush2.msra.mxu0 0.0
        %325 = vmatprep.subr.mxu0 0.0
        %326 = vmatpush2.msra.mxu0 0.0
        %327 = vmatprep.mubr.f32.mxu0 0.0
        %328 = vmatmul.mubr.f32.gmra.mxu0 %v240
        %v329 = vpop.f32.mrf.mxu0
        %v330 = vadd.f32 %v236, %v329
        %v331 = vpop.f32.mrf.mxu0
        %332 = vmatprep.mubr.f32.mxu0 0.0
        %333 = vmatmul.mubr.f32.gmra.mxu0 %v243
        %v334 = vpop.f32.mrf.mxu0
        %v335 = vadd.f32 %v236, %v334
        %v336 = vpop.f32.mrf.mxu0
        %337 = vmatprep.mubr.f32.mxu0 0.0
        %338 = vmatmul.mubr.f32.gmra.mxu0 %v246
        %v339 = vpop.f32.mrf.mxu0
        %v340 = vadd.f32 %v236, %v339
        %v341 = vpop.f32.mrf.mxu0
        %342 = vmatprep.mubr.f32.mxu0 0.0
        %343 = vmatmul.mubr.f32.gmra.mxu0 %v249
        %v344 = vpop.f32.mrf.mxu0
        %v345 = vadd.f32 %v236, %v344
        %v346 = vpop.f32.mrf.mxu0
        %347 = vmatprep.mubr.f32.mxu0 0.0
        %348 = vmatmul.mubr.f32.gmra.mxu0 %v252
        %v349 = vpop.f32.mrf.mxu0
        %v350 = vadd.f32 %v236, %v349
        %v351 = vpop.f32.mrf.mxu0
        %352 = vmatprep.mubr.f32.mxu0 0.0
        %353 = vmatmul.mubr.f32.gmra.mxu0 %v255
        %v354 = vpop.f32.mrf.mxu0
        %v355 = vadd.f32 %v236, %v354
        %v356 = vpop.f32.mrf.mxu0
        %357 = vmatprep.mubr.f32.mxu0 0.0
        %358 = vmatmul.mubr.f32.gmra.mxu0 %v258
        %v359 = vpop.f32.mrf.mxu0
        %v360 = vadd.f32 %v236, %v359
        %v361 = vpop.f32.mrf.mxu0
        %362 = vmatprep.mubr.f32.mxu0 0.0
        %363 = vmatmul.mubr.f32.gmra.mxu0 %v261
        %v364 = vpop.f32.mrf.mxu0
        %v365 = vadd.f32 %v236, %v364
        %v366 = vpop.f32.mrf.mxu0
        %367 = vdwg.mxu0
        %368 = vst [vmem:[%s202] sm:$0xff] %v330
        %369 = vst [vmem:[%s202 + $0x8] sm:$0xff] %v335
        %370 = vst [vmem:[%s202 + $0x10] sm:$0xff] %v340
        %371 = vst [vmem:[%s202 + $0x18] sm:$0xff] %v345
        %372 = vst [vmem:[%s202 + $0x20] sm:$0xff] %v350
        %373 = vst [vmem:[%s202 + $0x28] sm:$0xff] %v355
        %374 = vst [vmem:[%s202 + $0x30] sm:$0xff] %v360
        %375 = vst [vmem:[%s202 + $0x38] sm:$0xff] %v365
        %s376 = sand.u32 %s117, 1
        %s377 = scalar_lea.sflag [#allocation3], %s376
        %s378 = sand.u32 %s117, 1
        %s379 = smul.addr %s378, 64
        %s380 = scalar_lea.vmem [#allocation2], %s379
        // Predicated region
        $region33: #{tpu_custom_call.1} parent=31 // pred_check
          %p381 = pneg %p127
        $region34: #{tpu_custom_call.1} parent=31 // pred_check_branch
          %383 = sbr.rel (%p381) target = $region36
        $region35: #{tpu_custom_call.1} parent=31 // pred_region
          %s384 = smul.u32 8, %s21
          %s386 = ssub.s32 1024, 1024
          %387 = vsyncadd %s377, %s386
          %s388 = sadd.s32 %s22, %s384
          %s389 = smul.addr %s388, 128
          %s390 = scalar_lea.hbm %s3, %s389
          %s391 = sshll.u32 %s380, 4
          %s392 = int_to_ptr.vmem [resolvable:$true] %s391
          %397 = dma.vmem_to_hbm [thread:$0]  %s392, 1024, %s390, %s377, 128, 128, 8
        $region36: #{tpu_custom_call.1} parent=31 // pred_fallthru
          _
      $region32: #{tpu_custom_call.1} parent=5 // pred_fallthru
        _
      %p398 = scmp.le.s32.totalorder 2, %s12
      // Predicated region
      $region37: #{tpu_custom_call.1} parent=5 // pred_check
        %p399 = pneg %p398
      $region38: #{tpu_custom_call.1} parent=5 // pred_check_branch
        %401 = sbr.rel (%p399) target = $region40
      $region39: #{tpu_custom_call.1} parent=5 // pred_region
        %s402 = ssub.s32 %s12, 2
        // Predicated region
        $region41: #{tpu_custom_call.1} parent=39 // pred_check
          %p403 = pneg %p133
        $region42: #{tpu_custom_call.1} parent=39 // pred_check_branch
          %405 = sbr.rel (%p403) target = $region44
        $region43: #{tpu_custom_call.1} parent=39 // pred_region
          %s406 = sand.u32 %s118, 1
          %s407 = scalar_lea.sflag [#allocation3], %s406
          %s408 = sand.u32 %s118, 1
          %s409 = smul.addr %s408, 64
          %s410 = scalar_lea.vmem [#allocation2], %s409
          %411 = dma.done %s407, 1024
        $region44: #{tpu_custom_call.1} parent=39 // pred_fallthru
          _
      $region40: #{tpu_custom_call.1} parent=5 // pred_fallthru
        _
    $region6: #{tpu_custom_call.1} parent=1 // loop_footer
      %s16 = sadd.s32 1, %s12
    $region7: #{tpu_custom_call.1} parent=1 // loop_footer_branch
      %11 = sbr.rel target = $region3
    $region8: #{tpu_custom_call.1} parent=1 // loop_exit
      _
    %412 = vsyncpa [#allocation3], 1
    %s413 = scalar_lea.sflag [#allocation3], 1
    %414 = vsyncpa %s413, 1

</llo_original>
